<compile_context>
chip_gen: v7x
topology: tpu7x:2x2x1
jax: 0.10.0
libtpu: 0.0.40
codegen_flags: <defaults>
</compile_context>

<pallas_src>
import jax
import jax.numpy as jnp
from jax.experimental import pallas as pl
from jax.experimental.pallas import tpu as pltpu


def _fusion_kernel(x_ref, w_ref, o_ref):
    """One batch-tile: o = sum_i W_i * x_i, fully unrolled over num_vecs.

    x_ref: (num_vecs, TILE, L)  -- stacked inputs for this batch tile
    w_ref: (num_vecs, L)        -- full weight table, VMEM-resident
    o_ref: (TILE, L)            -- written exactly once
    """
    num_vecs = x_ref.shape[0]
    w = w_ref[...].astype(jnp.float32)                      # (num_vecs, L)
    acc = x_ref[0].astype(jnp.float32) * w[0:1, :]          # (TILE, L) * (1, L)
    for i in range(1, num_vecs):                            # static -> unrolled
        acc += x_ref[i].astype(jnp.float32) * w[i:i + 1, :]
    o_ref[...] = acc.astype(o_ref.dtype)


def _pick_tile(n, target):
    """Largest 8-aligned tile <= target that divides n; else the full extent."""
    if n <= target:
        return n
    t = (min(target, n) // 8) * 8
    while t >= 8:
        if n % t == 0:
            return t
        t -= 8
    # No aligned divisor -> take the full extent (block == array dim is legal).
    return n


def additive_fusion(xs_stacked, weights, *, target_tile=512):
    """xs_stacked: (num_vecs, batch, vec_dim); weights: (num_vecs, vec_dim)."""
    num_vecs, batch, vec_dim = xs_stacked.shape
    assert weights.shape == (num_vecs, vec_dim)
    out_dtype = xs_stacked.dtype

    # Lane-dense repacking: fold batch into the 128-lane axis when vec_dim is a
    # small divisor of 128 (elementwise op -> layout plumbing only; the weight
    # pattern simply repeats 128//vec_dim times along each folded row).
    if vec_dim % 128 != 0 and 128 % vec_dim == 0 and (batch * vec_dim) % 128 == 0:
        reps = 128 // vec_dim
        lane = 128
        rows = (batch * vec_dim) // 128
        x2 = xs_stacked.reshape(num_vecs, rows, lane)
        w2 = jnp.tile(weights, (1, reps))  # (num_vecs, 128)
        folded = True
    else:
        lane = vec_dim
        rows = batch
        x2 = xs_stacked
        w2 = weights
        folded = False

    tile = _pick_tile(rows, target_tile)
    grid = (rows // tile,)

    out = pl.pallas_call(
        _fusion_kernel,
        out_shape=jax.ShapeDtypeStruct((rows, lane), out_dtype),
        grid_spec=pltpu.PrefetchScalarGridSpec(
            num_scalar_prefetch=0,
            grid=grid,
            in_specs=[
                # x tile: all vecs for this batch-tile (streamed, double-buffered).
                pl.BlockSpec((num_vecs, tile, lane), lambda b: (0, b, 0)),
                # full weight table; same block every step -> stays resident.
                pl.BlockSpec((num_vecs, lane), lambda b: (0, 0)),
            ],
            out_specs=pl.BlockSpec((tile, lane), lambda b: (b, 0)),
        ),
        compiler_params=pltpu.CompilerParams(
            dimension_semantics=("parallel",),   # independent batch tiles
            vmem_limit_bytes=32 * 1024 * 1024,
        ),
    )(x2, w2)

    return out.reshape(batch, vec_dim) if folded else out


def additive_fusion_ref(xs_stacked, weights):
    """Pure-JAX reference of the PyTorch forward (f32 accumulate)."""
    acc = jnp.sum(
        xs_stacked.astype(jnp.float32) * weights[:, None, :].astype(jnp.float32),
        axis=0,
    )
    return acc.astype(xs_stacked.dtype)


if __name__ == "__main__":
    key = jax.random.PRNGKey(0)
    kw, kx, kw2, kx2 = jax.random.split(key, 4)

    # --- small test matching the module: num_vecs=3, batch=8, vec_dim=32 ---
    num_vecs, batch, vec_dim = 3, 8, 32
    weights = jax.random.normal(kw, (num_vecs, vec_dim), dtype=jnp.float32)
    xs = jax.random.normal(kx, (num_vecs, batch, vec_dim), dtype=jnp.float32)

    out = jax.block_until_ready(additive_fusion(xs, weights))
    ref = additive_fusion_ref(xs, weights)
    assert out.shape == (batch, vec_dim)
    assert jnp.allclose(out, ref, atol=1e-5, rtol=1e-5)

    # --- second check exercising the tiled (grid > 1) lane-aligned path ---
    nv2, b2, d2 = 4, 128, 128
    w2 = jax.random.normal(kw2, (nv2, d2), dtype=jnp.float32)
    x2 = jax.random.normal(kx2, (nv2, b2, d2), dtype=jnp.float32)
    out2 = jax.block_until_ready(additive_fusion(x2, w2, target_tile=32))
    assert jnp.allclose(out2, additive_fusion_ref(x2, w2), atol=1e-5, rtol=1e-5)

    print("KERNEL_OK")
</pallas_src>

<mosaic_0001>
module attributes {stable_mosaic.version = 11 : i64} {
  func.func @_fusion_kernel(%arg0: i32, %arg1: memref<3x2x128xf32, #tpu.memory_space<vmem>>, %arg2: memref<3x128xf32, #tpu.memory_space<vmem>>, %arg3: memref<2x128xf32, #tpu.memory_space<vmem>>) attributes {dimension_semantics = [#tpu.dimension_semantics<parallel>], iteration_bounds = array<i64: 1>, scalar_prefetch = 0 : i64, scratch_operands = 0 : i64, tpu.core_type = #tpu.core_type<tc>, window_params = [{transform_indices = @transform_0, window_bounds = array<i64: 3, 2, 128>}, {pipeline_mode = #tpu.pipeline_mode<synchronous>, transform_indices = @transform_1, window_bounds = array<i64: 3, 128>}, {transform_indices = @transform_2, window_bounds = array<i64: 2, 128>}]} {
    %c0 = arith.constant 0 : index
    %c0_0 = arith.constant 0 : index
    %0 = vector.load %arg2[%c0, %c0_0] : memref<3x128xf32, #tpu.memory_space<vmem>>, vector<3x128xf32>
    %c0_1 = arith.constant 0 : index
    %c0_2 = arith.constant 0 : index
    %c0_3 = arith.constant 0 : index
    %1 = vector.load %arg1[%c0_1, %c0_2, %c0_3] : memref<3x2x128xf32, #tpu.memory_space<vmem>>, vector<1x2x128xf32>
    %2 = vector.shape_cast %1 : vector<1x2x128xf32> to vector<2x128xf32>
    %3 = vector.extract_strided_slice %0 {offsets = [0, 0], sizes = [1, 128], strides = [1, 1]} : vector<3x128xf32> to vector<1x128xf32>
    %4 = vector.broadcast %3 : vector<1x128xf32> to vector<2x128xf32>
    %5 = arith.mulf %2, %4 : vector<2x128xf32>
    %c1 = arith.constant 1 : index
    %c0_4 = arith.constant 0 : index
    %c0_5 = arith.constant 0 : index
    %6 = vector.load %arg1[%c1, %c0_4, %c0_5] : memref<3x2x128xf32, #tpu.memory_space<vmem>>, vector<1x2x128xf32>
    %7 = vector.shape_cast %6 : vector<1x2x128xf32> to vector<2x128xf32>
    %8 = vector.extract_strided_slice %0 {offsets = [1, 0], sizes = [1, 128], strides = [1, 1]} : vector<3x128xf32> to vector<1x128xf32>
    %9 = vector.broadcast %8 : vector<1x128xf32> to vector<2x128xf32>
    %10 = arith.mulf %7, %9 : vector<2x128xf32>
    %11 = arith.addf %5, %10 : vector<2x128xf32>
    %c2 = arith.constant 2 : index
    %c0_6 = arith.constant 0 : index
    %c0_7 = arith.constant 0 : index
    %12 = vector.load %arg1[%c2, %c0_6, %c0_7] : memref<3x2x128xf32, #tpu.memory_space<vmem>>, vector<1x2x128xf32>
    %13 = vector.shape_cast %12 : vector<1x2x128xf32> to vector<2x128xf32>
    %14 = vector.extract_strided_slice %0 {offsets = [2, 0], sizes = [1, 128], strides = [1, 1]} : vector<3x128xf32> to vector<1x128xf32>
    %15 = vector.broadcast %14 : vector<1x128xf32> to vector<2x128xf32>
    %16 = arith.mulf %13, %15 : vector<2x128xf32>
    %17 = arith.addf %11, %16 : vector<2x128xf32>
    %c0_8 = arith.constant 0 : index
    %c0_9 = arith.constant 0 : index
    %18 = vector.load %arg3[%c0_8, %c0_9] : memref<2x128xf32, #tpu.memory_space<vmem>>, vector<2x128xf32>
    tpu.vector_store %arg3[%c0_8, %c0_9], %17 {strides = array<i32>} : memref<2x128xf32, #tpu.memory_space<vmem>>, vector<2x128xf32>,
    return
  }
  func.func @transform_0(%arg0: i32) -> (i32, i32, i32) {
    %c0_i32 = arith.constant 0 : i32
    %c0_i32_0 = arith.constant 0 : i32
    %c0_i32_1 = arith.constant 0 : i32
    return %c0_i32, %arg0, %c0_i32_0 : i32, i32, i32
  }
  func.func @transform_1(%arg0: i32) -> (i32, i32) {
    %c0_i32 = arith.constant 0 : i32
    %c0_i32_0 = arith.constant 0 : i32
    %c0_i32_1 = arith.constant 0 : i32
    return %c0_i32, %c0_i32_0 : i32, i32
  }
  func.func @transform_2(%arg0: i32) -> (i32, i32) {
    %c0_i32 = arith.constant 0 : i32
    %c0_i32_0 = arith.constant 0 : i32
    return %arg0, %c0_i32 : i32, i32
  }
}

</mosaic_0001>

<llo_original>
// kernel: tpu_custom_call.1
$region0: #{tpu_custom_call.1}
  #allocation0 [shape = 'u32[]', space=smem, size = 0x4, offset = 0x4, fixed_abs, tag = 'smem constant byte address 0x4 - core index']
  #allocation1 [shape = 'u32[144,128]{1,0:T(1,128)}', space=vmem, size = 0x12000, scoped, tag = 'internal scratch']
  %s0 = inlined_call_operand.hbm [shape: f32[3,2,128], index: 0, kind: input, shape index: {}]
  %s1 = inlined_call_operand.hbm [shape: f32[3,128], index: 1, kind: input, shape index: {}]
  %s2 = inlined_call_operand.hbm [shape: f32[2,128], index: 2, kind: output, shape index: {}]
  %s3 = sld [smem:[#allocation0]]
  $region26: #{tpu_custom_call.1} parent=0
    _
  %s5 = ssub.s32 1, %s3
  %s6 = scalar_select 0, %s5, %s3
  $region1: #{tpu_custom_call.1} parent=0
    #allocation2 [shape = 'u8[3072]{0}', space=vmem, size = 0xc00, scoped, tag = 'input window, operand 0, single buffered']
    #allocation3 [shape = 's32[1]{0}', space=sflag, size = 0x4, scoped, tag = 'scoped memory for tpu_custom_call.1']
    #allocation4 [shape = 's32[1]{0}', space=sflag, size = 0x4, scoped, tag = 'scoped memory for tpu_custom_call.1']
    #allocation5 [shape = 'u8[2048]{0}', space=vmem, size = 0x800, scoped, tag = 'input window, operand 1, single buffered']
    #allocation6 [shape = 's32[1]{0}', space=sflag, size = 0x4, scoped, tag = 'scoped memory for tpu_custom_call.1']
    #allocation7 [shape = 'u8[1024]{0}', space=vmem, size = 0x400, scoped, tag = 'output window, operand 0, single buffered']
    %7 = vsyncpa [#allocation3], 0
    %8 = vsyncpa [#allocation6], 0
    %9 = vsyncpa [#allocation4], 0
    // Predicated region
    $region2: #{tpu_custom_call.1} parent=1 // pred_check
      _
    $region3: #{tpu_custom_call.1} parent=1 // pred_check_branch
      %11 = sbr.rel (0) target = $region5
    $region4: #{tpu_custom_call.1} parent=1 // pred_region
      %s13 = ssub.s32 96, 96
      %14 = vsyncadd [#allocation3], %s13
      %s15 = sshll.u32 [#allocation2], 4
      %s16 = int_to_ptr.vmem [resolvable:$true] %s15
      %21 = dma.hbm_to_vmem [thread:$0]  %s0, 96, %s16, [#allocation3], 32, 32, 2
    $region5: #{tpu_custom_call.1} parent=1 // pred_fallthru
      _
    // Predicated region
    $region6: #{tpu_custom_call.1} parent=1 // pred_check
      _
    $region7: #{tpu_custom_call.1} parent=1 // pred_check_branch
      %23 = sbr.rel (0) target = $region9
    $region8: #{tpu_custom_call.1} parent=1 // pred_region
      %s25 = ssub.s32 64, 64
      %26 = vsyncadd [#allocation6], %s25
      %s28 = sshll.u32 [#allocation5], 4
      %s29 = int_to_ptr.vmem [resolvable:$true] %s28
      %31 = dma.hbm_to_vmem [thread:$0]  %s1, 64, %s29, [#allocation6]
    $region9: #{tpu_custom_call.1} parent=1 // pred_fallthru
      _
    // Predicated region
    $region10: #{tpu_custom_call.1} parent=1 // pred_check
      _
    $region11: #{tpu_custom_call.1} parent=1 // pred_check_branch
      %33 = sbr.rel (0) target = $region13
    $region12: #{tpu_custom_call.1} parent=1 // pred_region
      %34 = dma.done [#allocation3], 96
    $region13: #{tpu_custom_call.1} parent=1 // pred_fallthru
      _
    // Predicated region
    $region14: #{tpu_custom_call.1} parent=1 // pred_check
      _
    $region15: #{tpu_custom_call.1} parent=1 // pred_check_branch
      %36 = sbr.rel (0) target = $region17
    $region16: #{tpu_custom_call.1} parent=1 // pred_region
      %37 = dma.done [#allocation6], 64
    $region17: #{tpu_custom_call.1} parent=1 // pred_fallthru
      _
    %v38 = vld [vmem:[#allocation5] sm:$0x7]
    %v39 = vld [vmem:[#allocation2] sm:$0x3]
    %v40 = vlaneseq
    %v41 = vshrl.u32 %v40, 7
    %v42 = vsub.s32 0, %v41
    %v43 = vrot.slane %v38, %v42
    %v44 = vmul.f32 %v39, %v43
    %s45 = scalar_lea.vmem [#allocation2], 2
    %v46 = vld [vmem:[%s45] sm:$0x3]
    %v47 = vlaneseq
    %v48 = vshrl.u32 %v47, 7
    %v49 = vsub.s32 1, %v48
    %v50 = vrot.slane %v38, %v49
    %v51 = vmul.f32 %v46, %v50
    %v52 = vadd.f32 %v44, %v51
    %s53 = scalar_lea.vmem [#allocation2], 4
    %v54 = vld [vmem:[%s53] sm:$0x3]
    %v55 = vlaneseq
    %v56 = vshrl.u32 %v55, 7
    %v57 = vsub.s32 2, %v56
    %v58 = vrot.slane %v38, %v57
    %v59 = vmul.f32 %v54, %v58
    %v60 = vadd.f32 %v52, %v59
    %61 = vst [vmem:[#allocation7] sm:$0x3] %v60
    // Predicated region
    $region18: #{tpu_custom_call.1} parent=1 // pred_check
      _
    $region19: #{tpu_custom_call.1} parent=1 // pred_check_branch
      %63 = sbr.rel (0) target = $region21
    $region20: #{tpu_custom_call.1} parent=1 // pred_region
      %s65 = ssub.s32 32, 32
      %66 = vsyncadd [#allocation4], %s65
      %s68 = sshll.u32 [#allocation7], 4
      %s69 = int_to_ptr.vmem [resolvable:$true] %s68
      %71 = dma.vmem_to_hbm [thread:$0]  %s69, 32, %s2, [#allocation4]
    $region21: #{tpu_custom_call.1} parent=1 // pred_fallthru
      _
    // Predicated region
    $region22: #{tpu_custom_call.1} parent=1 // pred_check
      _
    $region23: #{tpu_custom_call.1} parent=1 // pred_check_branch
      %73 = sbr.rel (0) target = $region25
    $region24: #{tpu_custom_call.1} parent=1 // pred_region
      %74 = dma.done [#allocation4], 32
    $region25: #{tpu_custom_call.1} parent=1 // pred_fallthru
      _
    %75 = vsyncpa [#allocation3], 1
    %76 = vsyncpa [#allocation6], 1
    %77 = vsyncpa [#allocation4], 1

</llo_original>
